<compile_context>
chip_gen: v6e
topology: v6e:2x2x1
jax: 0.10.0
libtpu: 0.0.40
codegen_flags: <defaults>
</compile_context>

<pallas_src>
import jax
import jax.numpy as jnp
from jax.experimental import pallas as pl
from jax.experimental.pallas import tpu as pltpu

EPS = 1e-5          # PyTorch BatchNorm1d default eps
LANE = 128


def _round_up(x, m):
    return (x + m - 1) // m * m


def _cdiv(a, b):
    return (a + b - 1) // b


def _vmem_capacity_bytes():
    """Per-chip VMEM capacity (128 MiB v5e/v6e, 64 MiB v7x); conservative fallback."""
    try:
        cap = int(pltpu.get_tpu_info().vmem_capacity_bytes)
        if cap > 0:
            return cap
    except Exception:
        pass
    return 64 * 1024 * 1024


def _make_kernel(n, tile_n, n_tiles, stash_x, eps):
    ragged = (n_tiles * tile_n != n)
    inv_n = 1.0 / n           # true batch size: padded rows never enter the stats

    def kernel(x_ref, w1t_ref, w2t_ref, bn1_ref, bn2_ref, o_ref, *scratch):
        if stash_x:
            x_all, h_sum, h_sq, r_sum, r_sq, s1, b1, s2, b2 = scratch
        else:
            h_sum, h_sq, r_sum, r_sq, s1, b1, s2, b2 = scratch

        p = pl.program_id(0)      # phase: 0 = h stats, 1 = r stats, 2 = write output
        t = pl.program_id(1)      # batch-row tile

        # ---- rows of x for this tile (VMEM-resident copy when the batch fits) ----
        if stash_x:
            row0 = pl.multiple_of(t * tile_n, 8)

            @pl.when(p == 0)
            def _():
                x_all[pl.ds(row0, tile_n), :] = x_ref[...]

            x = x_all[pl.ds(row0, tile_n), :]
        else:
            x = x_ref[...]

        if ragged:
            # Mask padded rows of the last tile (out-of-bounds reads are undefined) so
            # they contribute exactly 0 to the BN batch statistics; their output rows
            # are dropped by the partial-block store.
            rows = t * tile_n + jax.lax.broadcasted_iota(jnp.int32, (tile_n, 1), 0)
            valid = rows < n
            x = jnp.where(valid, x, jnp.zeros_like(x))

        def linear1():
            # native-dtype operands on the MXU, f32 accumulation
            return jnp.dot(x, w1t_ref[...], preferred_element_type=jnp.float32)

        def bn1_relu(h):
            return jnp.maximum(h * s1[...] + b1[...], 0.0)

        def linear2(h):
            return jnp.dot(h.astype(w2t_ref.dtype), w2t_ref[...],
                           preferred_element_type=jnp.float32)

        # ---------------- phase 0: per-feature sum / sumsq of h ----------------
        @pl.when(p == 0)
        def _():
            @pl.when(t == 0)
            def _():
                h_sum[...] = jnp.zeros_like(h_sum)
                h_sq[...] = jnp.zeros_like(h_sq)

            h = linear1()                      # masked x rows give h rows == 0
            h_sum[...] += jnp.sum(h, axis=0, keepdims=True)
            h_sq[...] += jnp.sum(h * h, axis=0, keepdims=True)

        # ------- phase-1 prologue: fold BN1 batch stats into scale / shift -------
        @pl.when((p == 1) & (t == 0))
        def _():
            m = h_sum[...] * inv_n
            var = jnp.maximum(h_sq[...] * inv_n - m * m, 0.0)   # clamp one-pass var
            sc = bn1_ref[0:1, :] * jax.lax.rsqrt(var + eps)     # rsqrt -> EUP
            s1[...] = sc
            b1[...] = bn1_ref[1:2, :] - m * sc
            r_sum[...] = jnp.zeros_like(r_sum)
            r_sq[...] = jnp.zeros_like(r_sq)

        # ------------- phase 1: BN1 + ReLU + matmul2, r statistics --------------
        @pl.when(p == 1)
        def _():
            r = linear2(bn1_relu(linear1()))
            if ragged:
                r = jnp.where(valid, r, 0.0)   # BN1 shift makes padded rows nonzero
            r_sum[...] += jnp.sum(r, axis=0, keepdims=True)
            r_sq[...] += jnp.sum(r * r, axis=0, keepdims=True)

        # ------- phase-2 prologue: fold BN2 batch stats into scale / shift -------
        @pl.when((p == 2) & (t == 0))
        def _():
            m = r_sum[...] * inv_n
            var = jnp.maximum(r_sq[...] * inv_n - m * m, 0.0)
            sc = bn2_ref[0:1, :] * jax.lax.rsqrt(var + eps)
            s2[...] = sc
            b2[...] = bn2_ref[1:2, :] - m * sc

        # ----------- phase 2: BN2 + residual + final ReLU, store tile -----------
        @pl.when(p == 2)
        def _():
            r = linear2(bn1_relu(linear1()))
            r = r * s2[...] + b2[...]
            o_ref[...] = jnp.maximum(x.astype(jnp.float32) + r, 0.0).astype(o_ref.dtype)

    return kernel


def prepare_residual_layer1d_params(w1, w2, gamma1, beta1, gamma2, beta2,
                                    compute_dtype=None):
    """One-time parameter prep: transpose weights, lane-pad the hidden dim, pack BN.

    w1: (C_hidden, C_in), w2: (C_in, C_hidden)  -- PyTorch nn.Linear layout.
    compute_dtype: optionally cast weights (e.g. jnp.bfloat16).  bf16 is full MXU
    rate on v5e, v6e and v7x; BN stats / rsqrt / residual stay in f32 in-kernel.
    Activations (x / out) are NOT padded -- only the hidden feature dim is.
    """
    c_hidden, c_in = w1.shape
    ch_p = _round_up(c_hidden, LANE)

    w1t = jnp.pad(jnp.transpose(w1), ((0, 0), (0, ch_p - c_hidden)))   # (C_in, Ch_p)
    w2t = jnp.pad(jnp.transpose(w2), ((0, ch_p - c_hidden), (0, 0)))   # (Ch_p, C_in)
    if compute_dtype is not None:
        w1t = w1t.astype(compute_dtype)
        w2t = w2t.astype(compute_dtype)

    # Packed BN params: row 0 = gamma, row 1 = beta.  Padded hidden features get
    # gamma = beta = 0, so they stay exactly 0 through BN1 / ReLU / matmul2.
    bn1 = jnp.pad(jnp.stack([gamma1, beta1]).astype(jnp.float32),
                  ((0, 0), (0, ch_p - c_hidden)))                       # (2, Ch_p)
    bn2 = jnp.stack([gamma2, beta2]).astype(jnp.float32)                # (2, C_in)
    return dict(w1t=w1t, w2t=w2t, bn1=bn1, bn2=bn2,
                c_in=c_in, c_hidden=c_hidden)


def _plan_tiles(n, c_in, ch_p, x_is, w_is, budget, tile_rows):
    # VMEM that does not scale with the batch tile (weights / BN params are
    # double-buffered by the pipeline even though fetched once) + stat scratch.
    fixed = (2 * 2 * c_in * ch_p * w_is          # w1t + w2t
             + 2 * 2 * (ch_p + c_in) * 4         # packed BN params
             + 8 * 8 * LANE * 4)                 # 8 small stat / affine scratch tiles
    # VMEM per batch row: x + out tiles (double-buffered) + f32 temporaries
    # (h, its cast for matmul2, BN/ReLU temp, r + temps).
    per_row = (2 * c_in * x_is + 2 * c_in * x_is
               + 3 * ch_p * 4 + 3 * c_in * 4)
    assert fixed + 8 * per_row <= budget, (
        "ResidualLayer1d: feature dims too large for the per-chip VMEM budget")
    max_rows = (budget - fixed) // per_row

    if tile_rows is None:
        tile_n = min(max_rows, 2048)        # fill the VMEM budget, cap the DMA granule
        tile_n = max((tile_n // 8) * 8, 8)  # sublane multiple (>=256 whenever possible)
    else:
        tile_n = int(tile_rows)
        assert tile_n >= n or tile_n % 8 == 0, \
            "tile_rows must be a multiple of 8 (or >= N)"

    if tile_n >= n:
        tile_n, n_tiles = n, 1
    else:
        n_tiles = _cdiv(n, tile_n)

    assert fixed + per_row * tile_n <= budget, (
        f"ResidualLayer1d: row tile of {tile_n} does not fit the VMEM budget")

    x_all_bytes = n_tiles * tile_n * c_in * x_is
    stash_x = (n_tiles > 1) and (fixed + per_row * tile_n + x_all_bytes <= budget)
    return tile_n, n_tiles, stash_x


def residual_layer1d(x, params, *, tile_rows=None):
    """x: (N, C_in), unpadded, f32 or bf16.  params: prepare_residual_layer1d_params()."""
    n, c_in = x.shape
    assert c_in == params["c_in"], "x feature dim does not match prepared params"
    w1t, w2t, bn1, bn2 = params["w1t"], params["w2t"], params["bn1"], params["bn2"]
    ch_p = w1t.shape[1]

    x_is = jnp.dtype(x.dtype).itemsize
    w_is = jnp.dtype(w1t.dtype).itemsize

    vmem_cap = _vmem_capacity_bytes()
    budget = int(vmem_cap * 0.6)     # headroom for Mosaic internal scratch / spills
    tile_n, n_tiles, stash_x = _plan_tiles(n, c_in, ch_p, x_is, w_is, budget, tile_rows)

    kernel = _make_kernel(n, tile_n, n_tiles, stash_x, EPS)

    # x only streams from HBM during phase 0 when stashed in VMEM; the output block
    # index only advances during phase 2, so phases 0/1 never write garbage to HBM.
    if stash_x:
        x_map = lambda p, t: (jnp.where(p == 0, t, 0), 0)
    else:
        x_map = lambda p, t: (t, 0)
    out_map = lambda p, t: (jnp.where(p == 2, t, 0), 0)
    full = lambda p, t: (0, 0)

    in_specs = [
        pl.BlockSpec((tile_n, c_in), x_map),
        pl.BlockSpec(w1t.shape, full),
        pl.BlockSpec(w2t.shape, full),
        pl.BlockSpec(bn1.shape, full),
        pl.BlockSpec(bn2.shape, full),
    ]
    out_specs = pl.BlockSpec((tile_n, c_in), out_map)

    scratch = []
    if stash_x:
        scratch.append(pltpu.VMEM((n_tiles * tile_n, c_in), x.dtype))
    scratch += [
        pltpu.VMEM((1, ch_p), jnp.float32),   # h sum
        pltpu.VMEM((1, ch_p), jnp.float32),   # h sumsq
        pltpu.VMEM((1, c_in), jnp.float32),   # r sum
        pltpu.VMEM((1, c_in), jnp.float32),   # r sumsq
        pltpu.VMEM((1, ch_p), jnp.float32),   # BN1 fused scale
        pltpu.VMEM((1, ch_p), jnp.float32),   # BN1 fused shift
        pltpu.VMEM((1, c_in), jnp.float32),   # BN2 fused scale
        pltpu.VMEM((1, c_in), jnp.float32),   # BN2 fused shift
    ]

    x_bytes = n * c_in * x_is
    w_bytes = 2 * c_in * ch_p * w_is
    read_passes = 1 if (stash_x or n_tiles == 1) else 3
    cost = pl.CostEstimate(
        flops=int(10 * n * c_in * ch_p),            # matmul1 x3 + matmul2 x2
        transcendentals=int(ch_p + c_in),           # the two rsqrt vectors
        bytes_accessed=int(read_passes * x_bytes + x_bytes + w_bytes))

    return pl.pallas_call(
        kernel,
        out_shape=jax.ShapeDtypeStruct((n, c_in), x.dtype),
        grid=(3, n_tiles),
        in_specs=in_specs,
        out_specs=out_specs,
        scratch_shapes=scratch,
        compiler_params=pltpu.CompilerParams(
            # both axes carry sequential deps (phase order, stat accumulation)
            dimension_semantics=("arbitrary", "arbitrary"),
            vmem_limit_bytes=int(vmem_cap * 0.9)),
        cost_estimate=cost,
    )(x, w1t, w2t, bn1, bn2)


def _reference(x, w1, w2, gamma1, beta1, gamma2, beta2):
    x32 = x.astype(jnp.float32)
    h = x32 @ w1.T
    m, v = jnp.mean(h, 0), jnp.var(h, 0)
    h = jnp.maximum((h - m) / jnp.sqrt(v + EPS) * gamma1 + beta1, 0.0)
    r = h @ w2.T
    m2, v2 = jnp.mean(r, 0), jnp.var(r, 0)
    r = (r - m2) / jnp.sqrt(v2 + EPS) * gamma2 + beta2
    return jnp.maximum(x32 + r, 0.0)


if __name__ == "__main__":
    C_IN, C_HIDDEN = 32, 64
    key = jax.random.PRNGKey(0)
    (k_w1, k_w2, k_g1, k_b1, k_g2, k_b2,
     k_x1, k_x2, k_x3, k_x4) = jax.random.split(key, 10)

    bound1 = 1.0 / (C_IN ** 0.5)
    bound2 = 1.0 / (C_HIDDEN ** 0.5)
    w1 = jax.random.uniform(k_w1, (C_HIDDEN, C_IN), jnp.float32, -bound1, bound1)
    w2 = jax.random.uniform(k_w2, (C_IN, C_HIDDEN), jnp.float32, -bound2, bound2)
    gamma1 = 1.0 + 0.1 * jax.random.normal(k_g1, (C_HIDDEN,), jnp.float32)
    beta1 = 0.1 * jax.random.normal(k_b1, (C_HIDDEN,), jnp.float32)
    gamma2 = 1.0 + 0.1 * jax.random.normal(k_g2, (C_IN,), jnp.float32)
    beta2 = 0.1 * jax.random.normal(k_b2, (C_IN,), jnp.float32)

    params = prepare_residual_layer1d_params(w1, w2, gamma1, beta1, gamma2, beta2)

    def check(x, out, atol, rtol, name):
        ref = _reference(x.astype(jnp.float32), w1, w2, gamma1, beta1, gamma2, beta2)
        assert out.shape == ref.shape, f"{name}: shape {out.shape} vs {ref.shape}"
        assert jnp.allclose(out.astype(jnp.float32), ref, atol=atol, rtol=rtol), \
            f"{name}: mismatch vs pure-JAX reference"

    # 1) single tile (grid (3, 1)): the whole small batch in one block
    x1 = jax.random.normal(k_x1, (8, C_IN), jnp.float32)
    out1 = jax.block_until_ready(residual_layer1d(x1, params))
    check(x1, out1, 1e-4, 1e-4, "single-tile f32")

    # 2) multi-tile, even split (grid (3, 3)); x stashed in VMEM -> 1R + 1W HBM passes
    x2 = jax.random.normal(k_x2, (24, C_IN), jnp.float32)
    out2 = jax.block_until_ready(residual_layer1d(x2, params, tile_rows=8))
    check(x2, out2, 1e-4, 1e-4, "multi-tile f32")

    # 3) ragged last tile (N=20, tile=8): padded rows masked out of the BN statistics
    x3 = jax.random.normal(k_x3, (20, C_IN), jnp.float32)
    out3 = jax.block_until_ready(residual_layer1d(x3, params, tile_rows=8))
    check(x3, out3, 1e-4, 1e-4, "ragged f32")

    # 4) bf16 activations + bf16 weights (halves the dominant HBM traffic)
    params_bf16 = prepare_residual_layer1d_params(
        w1, w2, gamma1, beta1, gamma2, beta2, compute_dtype=jnp.bfloat16)
    x4 = jax.random.normal(k_x4, (32, C_IN), jnp.float32).astype(jnp.bfloat16)
    out4 = jax.block_until_ready(residual_layer1d(x4, params_bf16, tile_rows=16))
    check(x4, out4, 5e-2, 5e-2, "multi-tile bf16")

    print("KERNEL_OK")
</pallas_src>

<mosaic_0001>
module attributes {stable_mosaic.version = 11 : i64} {
  func.func @kernel(%arg0: i32, %arg1: i32, %arg2: memref<8x32xf32, #tpu.memory_space<vmem>>, %arg3: memref<32x128xf32, #tpu.memory_space<vmem>>, %arg4: memref<128x32xf32, #tpu.memory_space<vmem>>, %arg5: memref<2x128xf32, #tpu.memory_space<vmem>>, %arg6: memref<2x32xf32, #tpu.memory_space<vmem>>, %arg7: memref<8x32xf32, #tpu.memory_space<vmem>>, %arg8: memref<1x128xf32, #tpu.memory_space<vmem>>, %arg9: memref<1x128xf32, #tpu.memory_space<vmem>>, %arg10: memref<1x32xf32, #tpu.memory_space<vmem>>, %arg11: memref<1x32xf32, #tpu.memory_space<vmem>>, %arg12: memref<1x128xf32, #tpu.memory_space<vmem>>, %arg13: memref<1x128xf32, #tpu.memory_space<vmem>>, %arg14: memref<1x32xf32, #tpu.memory_space<vmem>>, %arg15: memref<1x32xf32, #tpu.memory_space<vmem>>) attributes {dimension_semantics = [#tpu.dimension_semantics<arbitrary>, #tpu.dimension_semantics<arbitrary>], iteration_bounds = array<i64: 3, 1>, scalar_prefetch = 0 : i64, scratch_operands = 8 : i64, tpu.core_type = #tpu.core_type<tc>, window_params = [{transform_indices = @transform_0, window_bounds = array<i64: 8, 32>}, {pipeline_mode = #tpu.pipeline_mode<synchronous>, transform_indices = @transform_1, window_bounds = array<i64: 32, 128>}, {pipeline_mode = #tpu.pipeline_mode<synchronous>, transform_indices = @transform_2, window_bounds = array<i64: 128, 32>}, {pipeline_mode = #tpu.pipeline_mode<synchronous>, transform_indices = @transform_3, window_bounds = array<i64: 2, 128>}, {pipeline_mode = #tpu.pipeline_mode<synchronous>, transform_indices = @transform_4, window_bounds = array<i64: 2, 32>}, {transform_indices = @transform_5, window_bounds = array<i64: 8, 32>}]} {
    %c0 = arith.constant 0 : index
    %c0_0 = arith.constant 0 : index
    %0 = vector.load %arg2[%c0, %c0_0] : memref<8x32xf32, #tpu.memory_space<vmem>>, vector<8x32xf32>
    %c0_i32 = arith.constant 0 : i32
    %1 = arith.cmpi eq, %arg0, %c0_i32 : i32
    %2 = arith.extui %1 : i1 to i32
    %c0_i32_1 = arith.constant 0 : i32
    %3 = arith.cmpi ne, %2, %c0_i32_1 : i32
    scf.if %3 {
      %c0_i32_10 = arith.constant 0 : i32
      %20 = arith.cmpi eq, %arg1, %c0_i32_10 : i32
      %21 = arith.extui %20 : i1 to i32
      %c0_i32_11 = arith.constant 0 : i32
      %22 = arith.cmpi ne, %21, %c0_i32_11 : i32
      scf.if %22 {
        %cst_24 = arith.constant 0.000000e+00 : f32
        %36 = vector.broadcast %cst_24 : f32 to vector<1x128xf32>
        %c0_25 = arith.constant 0 : index
        %c0_26 = arith.constant 0 : index
        %37 = vector.load %arg8[%c0_25, %c0_26] : memref<1x128xf32, #tpu.memory_space<vmem>>, vector<1x128xf32>
        tpu.vector_store %arg8[%c0_25, %c0_26], %36 {strides = array<i32>} : memref<1x128xf32, #tpu.memory_space<vmem>>, vector<1x128xf32>,
        %cst_27 = arith.constant 0.000000e+00 : f32
        %38 = vector.broadcast %cst_27 : f32 to vector<1x128xf32>
        %c0_28 = arith.constant 0 : index
        %c0_29 = arith.constant 0 : index
        %39 = vector.load %arg9[%c0_28, %c0_29] : memref<1x128xf32, #tpu.memory_space<vmem>>, vector<1x128xf32>
        tpu.vector_store %arg9[%c0_28, %c0_29], %38 {strides = array<i32>} : memref<1x128xf32, #tpu.memory_space<vmem>>, vector<1x128xf32>,
      } else {
      }
      %c0_12 = arith.constant 0 : index
      %c0_13 = arith.constant 0 : index
      %23 = vector.load %arg3[%c0_12, %c0_13] : memref<32x128xf32, #tpu.memory_space<vmem>>, vector<32x128xf32>
      %cst = arith.constant dense<0.000000e+00> : vector<8x128xf32>
      %24 = tpu.matmul %0, %23, %cst {dimension_numbers = #tpu.dot_dimension_numbers<[1], [0], [0], [1], [0, 0, 1, 1], [], []>} : vector<8x32xf32>, vector<32x128xf32>, vector<8x128xf32> -> vector<8x128xf32>
      %c0_14 = arith.constant 0 : index
      %c0_15 = arith.constant 0 : index
      %25 = vector.load %arg8[%c0_14, %c0_15] : memref<1x128xf32, #tpu.memory_space<vmem>>, vector<1x128xf32>
      %cst_16 = arith.constant dense<0.000000e+00> : vector<128xf32>
      %26 = vector.multi_reduction <add>, %24, %cst_16 [0] : vector<8x128xf32> to vector<128xf32>
      %27 = vector.shape_cast %26 : vector<128xf32> to vector<1x128xf32>
      %28 = arith.addf %25, %27 : vector<1x128xf32>
      %c0_17 = arith.constant 0 : index
      %c0_18 = arith.constant 0 : index
      %29 = vector.load %arg8[%c0_17, %c0_18] : memref<1x128xf32, #tpu.memory_space<vmem>>, vector<1x128xf32>
      tpu.vector_store %arg8[%c0_17, %c0_18], %28 {strides = array<i32>} : memref<1x128xf32, #tpu.memory_space<vmem>>, vector<1x128xf32>,
      %c0_19 = arith.constant 0 : index
      %c0_20 = arith.constant 0 : index
      %30 = vector.load %arg9[%c0_19, %c0_20] : memref<1x128xf32, #tpu.memory_space<vmem>>, vector<1x128xf32>
      %31 = arith.mulf %24, %24 : vector<8x128xf32>
      %cst_21 = arith.constant dense<0.000000e+00> : vector<128xf32>
      %32 = vector.multi_reduction <add>, %31, %cst_21 [0] : vector<8x128xf32> to vector<128xf32>
      %33 = vector.shape_cast %32 : vector<128xf32> to vector<1x128xf32>
      %34 = arith.addf %30, %33 : vector<1x128xf32>
      %c0_22 = arith.constant 0 : index
      %c0_23 = arith.constant 0 : index
      %35 = vector.load %arg9[%c0_22, %c0_23] : memref<1x128xf32, #tpu.memory_space<vmem>>, vector<1x128xf32>
      tpu.vector_store %arg9[%c0_22, %c0_23], %34 {strides = array<i32>} : memref<1x128xf32, #tpu.memory_space<vmem>>, vector<1x128xf32>,
    } else {
    }
    %c1_i32 = arith.constant 1 : i32
    %4 = arith.cmpi eq, %arg0, %c1_i32 : i32
    %c0_i32_2 = arith.constant 0 : i32
    %5 = arith.cmpi eq, %arg1, %c0_i32_2 : i32
    %6 = arith.andi %4, %5 : i1
    %7 = arith.extui %6 : i1 to i32
    %c0_i32_3 = arith.constant 0 : i32
    %8 = arith.cmpi ne, %7, %c0_i32_3 : i32
    scf.if %8 {
      %c0_10 = arith.constant 0 : index
      %c0_11 = arith.constant 0 : index
      %20 = vector.load %arg8[%c0_10, %c0_11] : memref<1x128xf32, #tpu.memory_space<vmem>>, vector<1x128xf32>
      %cst = arith.constant 1.250000e-01 : f32
      %21 = vector.broadcast %cst : f32 to vector<1x128xf32>
      %22 = arith.mulf %20, %21 : vector<1x128xf32>
      %c0_12 = arith.constant 0 : index
      %c0_13 = arith.constant 0 : index
      %23 = vector.load %arg9[%c0_12, %c0_13] : memref<1x128xf32, #tpu.memory_space<vmem>>, vector<1x128xf32>
      %cst_14 = arith.constant 1.250000e-01 : f32
      %24 = vector.broadcast %cst_14 : f32 to vector<1x128xf32>
      %25 = arith.mulf %23, %24 : vector<1x128xf32>
      %26 = arith.mulf %22, %22 : vector<1x128xf32>
      %27 = arith.subf %25, %26 : vector<1x128xf32>
      %cst_15 = arith.constant 0.000000e+00 : f32
      %28 = vector.broadcast %cst_15 : f32 to vector<1x128xf32>
      %29 = arith.maximumf %27, %28 : vector<1x128xf32>
      %c0_16 = arith.constant 0 : index
      %c0_17 = arith.constant 0 : index
      %30 = vector.load %arg5[%c0_16, %c0_17] : memref<2x128xf32, #tpu.memory_space<vmem>>, vector<1x128xf32>
      %cst_18 = arith.constant 9.99999974E-6 : f32
      %31 = vector.broadcast %cst_18 : f32 to vector<1x128xf32>
      %32 = arith.addf %29, %31 : vector<1x128xf32>
      %33 = math.rsqrt %32 : vector<1x128xf32>
      %34 = arith.mulf %30, %33 : vector<1x128xf32>
      %c0_19 = arith.constant 0 : index
      %c0_20 = arith.constant 0 : index
      %35 = vector.load %arg12[%c0_19, %c0_20] : memref<1x128xf32, #tpu.memory_space<vmem>>, vector<1x128xf32>
      tpu.vector_store %arg12[%c0_19, %c0_20], %34 {strides = array<i32>} : memref<1x128xf32, #tpu.memory_space<vmem>>, vector<1x128xf32>,
      %c1 = arith.constant 1 : index
      %c0_21 = arith.constant 0 : index
      %36 = vector.load %arg5[%c1, %c0_21] : memref<2x128xf32, #tpu.memory_space<vmem>>, vector<1x128xf32>
      %37 = arith.mulf %22, %34 : vector<1x128xf32>
      %38 = arith.subf %36, %37 : vector<1x128xf32>
      %c0_22 = arith.constant 0 : index
      %c0_23 = arith.constant 0 : index
      %39 = vector.load %arg13[%c0_22, %c0_23] : memref<1x128xf32, #tpu.memory_space<vmem>>, vector<1x128xf32>
      tpu.vector_store %arg13[%c0_22, %c0_23], %38 {strides = array<i32>} : memref<1x128xf32, #tpu.memory_space<vmem>>, vector<1x128xf32>,
      %cst_24 = arith.constant 0.000000e+00 : f32
      %40 = vector.broadcast %cst_24 : f32 to vector<1x32xf32>
      %c0_25 = arith.constant 0 : index
      %c0_26 = arith.constant 0 : index
      %41 = vector.load %arg10[%c0_25, %c0_26] : memref<1x32xf32, #tpu.memory_space<vmem>>, vector<1x32xf32>
      tpu.vector_store %arg10[%c0_25, %c0_26], %40 {strides = array<i32>} : memref<1x32xf32, #tpu.memory_space<vmem>>, vector<1x32xf32>,
      %cst_27 = arith.constant 0.000000e+00 : f32
      %42 = vector.broadcast %cst_27 : f32 to vector<1x32xf32>
      %c0_28 = arith.constant 0 : index
      %c0_29 = arith.constant 0 : index
      %43 = vector.load %arg11[%c0_28, %c0_29] : memref<1x32xf32, #tpu.memory_space<vmem>>, vector<1x32xf32>
      tpu.vector_store %arg11[%c0_28, %c0_29], %42 {strides = array<i32>} : memref<1x32xf32, #tpu.memory_space<vmem>>, vector<1x32xf32>,
    } else {
    }
    %c1_i32_4 = arith.constant 1 : i32
    %9 = arith.cmpi eq, %arg0, %c1_i32_4 : i32
    %10 = arith.extui %9 : i1 to i32
    %c0_i32_5 = arith.constant 0 : i32
    %11 = arith.cmpi ne, %10, %c0_i32_5 : i32
    scf.if %11 {
      %c0_10 = arith.constant 0 : index
      %c0_11 = arith.constant 0 : index
      %20 = vector.load %arg3[%c0_10, %c0_11] : memref<32x128xf32, #tpu.memory_space<vmem>>, vector<32x128xf32>
      %cst = arith.constant dense<0.000000e+00> : vector<8x128xf32>
      %21 = tpu.matmul %0, %20, %cst {dimension_numbers = #tpu.dot_dimension_numbers<[1], [0], [0], [1], [0, 0, 1, 1], [], []>} : vector<8x32xf32>, vector<32x128xf32>, vector<8x128xf32> -> vector<8x128xf32>
      %c0_12 = arith.constant 0 : index
      %c0_13 = arith.constant 0 : index
      %22 = vector.load %arg12[%c0_12, %c0_13] : memref<1x128xf32, #tpu.memory_space<vmem>>, vector<1x128xf32>
      %23 = vector.broadcast %22 : vector<1x128xf32> to vector<8x128xf32>
      %24 = arith.mulf %21, %23 : vector<8x128xf32>
      %c0_14 = arith.constant 0 : index
      %c0_15 = arith.constant 0 : index
      %25 = vector.load %arg13[%c0_14, %c0_15] : memref<1x128xf32, #tpu.memory_space<vmem>>, vector<1x128xf32>
      %26 = vector.broadcast %25 : vector<1x128xf32> to vector<8x128xf32>
      %27 = arith.addf %24, %26 : vector<8x128xf32>
      %cst_16 = arith.constant 0.000000e+00 : f32
      %28 = vector.broadcast %cst_16 : f32 to vector<8x128xf32>
      %29 = arith.maximumf %27, %28 : vector<8x128xf32>
      %c0_17 = arith.constant 0 : index
      %c0_18 = arith.constant 0 : index
      %30 = vector.load %arg4[%c0_17, %c0_18] : memref<128x32xf32, #tpu.memory_space<vmem>>, vector<128x32xf32>
      %cst_19 = arith.constant dense<0.000000e+00> : vector<8x32xf32>
      %31 = tpu.matmul %29, %30, %cst_19 {dimension_numbers = #tpu.dot_dimension_numbers<[1], [0], [0], [1], [0, 0, 1, 1], [], []>} : vector<8x128xf32>, vector<128x32xf32>, vector<8x32xf32> -> vector<8x32xf32>
      %c0_20 = arith.constant 0 : index
      %c0_21 = arith.constant 0 : index
      %32 = vector.load %arg10[%c0_20, %c0_21] : memref<1x32xf32, #tpu.memory_space<vmem>>, vector<1x32xf32>
      %cst_22 = arith.constant dense<0.000000e+00> : vector<32xf32>
      %33 = vector.multi_reduction <add>, %31, %cst_22 [0] : vector<8x32xf32> to vector<32xf32>
      %34 = vector.shape_cast %33 : vector<32xf32> to vector<1x32xf32>
      %35 = arith.addf %32, %34 : vector<1x32xf32>
      %c0_23 = arith.constant 0 : index
      %c0_24 = arith.constant 0 : index
      %36 = vector.load %arg10[%c0_23, %c0_24] : memref<1x32xf32, #tpu.memory_space<vmem>>, vector<1x32xf32>
      tpu.vector_store %arg10[%c0_23, %c0_24], %35 {strides = array<i32>} : memref<1x32xf32, #tpu.memory_space<vmem>>, vector<1x32xf32>,
      %c0_25 = arith.constant 0 : index
      %c0_26 = arith.constant 0 : index
      %37 = vector.load %arg11[%c0_25, %c0_26] : memref<1x32xf32, #tpu.memory_space<vmem>>, vector<1x32xf32>
      %38 = arith.mulf %31, %31 : vector<8x32xf32>
      %cst_27 = arith.constant dense<0.000000e+00> : vector<32xf32>
      %39 = vector.multi_reduction <add>, %38, %cst_27 [0] : vector<8x32xf32> to vector<32xf32>
      %40 = vector.shape_cast %39 : vector<32xf32> to vector<1x32xf32>
      %41 = arith.addf %37, %40 : vector<1x32xf32>
      %c0_28 = arith.constant 0 : index
      %c0_29 = arith.constant 0 : index
      %42 = vector.load %arg11[%c0_28, %c0_29] : memref<1x32xf32, #tpu.memory_space<vmem>>, vector<1x32xf32>
      tpu.vector_store %arg11[%c0_28, %c0_29], %41 {strides = array<i32>} : memref<1x32xf32, #tpu.memory_space<vmem>>, vector<1x32xf32>,
    } else {
    }
    %c2_i32 = arith.constant 2 : i32
    %12 = arith.cmpi eq, %arg0, %c2_i32 : i32
    %c0_i32_6 = arith.constant 0 : i32
    %13 = arith.cmpi eq, %arg1, %c0_i32_6 : i32
    %14 = arith.andi %12, %13 : i1
    %15 = arith.extui %14 : i1 to i32
    %c0_i32_7 = arith.constant 0 : i32
    %16 = arith.cmpi ne, %15, %c0_i32_7 : i32
    scf.if %16 {
      %c0_10 = arith.constant 0 : index
      %c0_11 = arith.constant 0 : index
      %20 = vector.load %arg10[%c0_10, %c0_11] : memref<1x32xf32, #tpu.memory_space<vmem>>, vector<1x32xf32>
      %cst = arith.constant 1.250000e-01 : f32
      %21 = vector.broadcast %cst : f32 to vector<1x32xf32>
      %22 = arith.mulf %20, %21 : vector<1x32xf32>
      %c0_12 = arith.constant 0 : index
      %c0_13 = arith.constant 0 : index
      %23 = vector.load %arg11[%c0_12, %c0_13] : memref<1x32xf32, #tpu.memory_space<vmem>>, vector<1x32xf32>
      %cst_14 = arith.constant 1.250000e-01 : f32
      %24 = vector.broadcast %cst_14 : f32 to vector<1x32xf32>
      %25 = arith.mulf %23, %24 : vector<1x32xf32>
      %26 = arith.mulf %22, %22 : vector<1x32xf32>
      %27 = arith.subf %25, %26 : vector<1x32xf32>
      %cst_15 = arith.constant 0.000000e+00 : f32
      %28 = vector.broadcast %cst_15 : f32 to vector<1x32xf32>
      %29 = arith.maximumf %27, %28 : vector<1x32xf32>
      %c0_16 = arith.constant 0 : index
      %c0_17 = arith.constant 0 : index
      %30 = vector.load %arg6[%c0_16, %c0_17] : memref<2x32xf32, #tpu.memory_space<vmem>>, vector<1x32xf32>
      %cst_18 = arith.constant 9.99999974E-6 : f32
      %31 = vector.broadcast %cst_18 : f32 to vector<1x32xf32>
      %32 = arith.addf %29, %31 : vector<1x32xf32>
      %33 = math.rsqrt %32 : vector<1x32xf32>
      %34 = arith.mulf %30, %33 : vector<1x32xf32>
      %c0_19 = arith.constant 0 : index
      %c0_20 = arith.constant 0 : index
      %35 = vector.load %arg14[%c0_19, %c0_20] : memref<1x32xf32, #tpu.memory_space<vmem>>, vector<1x32xf32>
      tpu.vector_store %arg14[%c0_19, %c0_20], %34 {strides = array<i32>} : memref<1x32xf32, #tpu.memory_space<vmem>>, vector<1x32xf32>,
      %c1 = arith.constant 1 : index
      %c0_21 = arith.constant 0 : index
      %36 = vector.load %arg6[%c1, %c0_21] : memref<2x32xf32, #tpu.memory_space<vmem>>, vector<1x32xf32>
      %37 = arith.mulf %22, %34 : vector<1x32xf32>
      %38 = arith.subf %36, %37 : vector<1x32xf32>
      %c0_22 = arith.constant 0 : index
      %c0_23 = arith.constant 0 : index
      %39 = vector.load %arg15[%c0_22, %c0_23] : memref<1x32xf32, #tpu.memory_space<vmem>>, vector<1x32xf32>
      tpu.vector_store %arg15[%c0_22, %c0_23], %38 {strides = array<i32>} : memref<1x32xf32, #tpu.memory_space<vmem>>, vector<1x32xf32>,
    } else {
    }
    %c2_i32_8 = arith.constant 2 : i32
    %17 = arith.cmpi eq, %arg0, %c2_i32_8 : i32
    %18 = arith.extui %17 : i1 to i32
    %c0_i32_9 = arith.constant 0 : i32
    %19 = arith.cmpi ne, %18, %c0_i32_9 : i32
    scf.if %19 {
      %c0_10 = arith.constant 0 : index
      %c0_11 = arith.constant 0 : index
      %20 = vector.load %arg3[%c0_10, %c0_11] : memref<32x128xf32, #tpu.memory_space<vmem>>, vector<32x128xf32>
      %cst = arith.constant dense<0.000000e+00> : vector<8x128xf32>
      %21 = tpu.matmul %0, %20, %cst {dimension_numbers = #tpu.dot_dimension_numbers<[1], [0], [0], [1], [0, 0, 1, 1], [], []>} : vector<8x32xf32>, vector<32x128xf32>, vector<8x128xf32> -> vector<8x128xf32>
      %c0_12 = arith.constant 0 : index
      %c0_13 = arith.constant 0 : index
      %22 = vector.load %arg12[%c0_12, %c0_13] : memref<1x128xf32, #tpu.memory_space<vmem>>, vector<1x128xf32>
      %23 = vector.broadcast %22 : vector<1x128xf32> to vector<8x128xf32>
      %24 = arith.mulf %21, %23 : vector<8x128xf32>
      %c0_14 = arith.constant 0 : index
      %c0_15 = arith.constant 0 : index
      %25 = vector.load %arg13[%c0_14, %c0_15] : memref<1x128xf32, #tpu.memory_space<vmem>>, vector<1x128xf32>
      %26 = vector.broadcast %25 : vector<1x128xf32> to vector<8x128xf32>
      %27 = arith.addf %24, %26 : vector<8x128xf32>
      %cst_16 = arith.constant 0.000000e+00 : f32
      %28 = vector.broadcast %cst_16 : f32 to vector<8x128xf32>
      %29 = arith.maximumf %27, %28 : vector<8x128xf32>
      %c0_17 = arith.constant 0 : index
      %c0_18 = arith.constant 0 : index
      %30 = vector.load %arg4[%c0_17, %c0_18] : memref<128x32xf32, #tpu.memory_space<vmem>>, vector<128x32xf32>
      %cst_19 = arith.constant dense<0.000000e+00> : vector<8x32xf32>
      %31 = tpu.matmul %29, %30, %cst_19 {dimension_numbers = #tpu.dot_dimension_numbers<[1], [0], [0], [1], [0, 0, 1, 1], [], []>} : vector<8x128xf32>, vector<128x32xf32>, vector<8x32xf32> -> vector<8x32xf32>
      %c0_20 = arith.constant 0 : index
      %c0_21 = arith.constant 0 : index
      %32 = vector.load %arg14[%c0_20, %c0_21] : memref<1x32xf32, #tpu.memory_space<vmem>>, vector<1x32xf32>
      %33 = vector.broadcast %32 : vector<1x32xf32> to vector<8x32xf32>
      %34 = arith.mulf %31, %33 : vector<8x32xf32>
      %c0_22 = arith.constant 0 : index
      %c0_23 = arith.constant 0 : index
      %35 = vector.load %arg15[%c0_22, %c0_23] : memref<1x32xf32, #tpu.memory_space<vmem>>, vector<1x32xf32>
      %36 = vector.broadcast %35 : vector<1x32xf32> to vector<8x32xf32>
      %37 = arith.addf %34, %36 : vector<8x32xf32>
      %38 = arith.addf %0, %37 : vector<8x32xf32>
      %cst_24 = arith.constant 0.000000e+00 : f32
      %39 = vector.broadcast %cst_24 : f32 to vector<8x32xf32>
      %40 = arith.maximumf %38, %39 : vector<8x32xf32>
      %c0_25 = arith.constant 0 : index
      %c0_26 = arith.constant 0 : index
      %41 = vector.load %arg7[%c0_25, %c0_26] : memref<8x32xf32, #tpu.memory_space<vmem>>, vector<8x32xf32>
      tpu.vector_store %arg7[%c0_25, %c0_26], %40 {strides = array<i32>} : memref<8x32xf32, #tpu.memory_space<vmem>>, vector<8x32xf32>,
    } else {
    }
    return
  }
  func.func @transform_0(%arg0: i32, %arg1: i32) -> (i32, i32) {
    %c0_i32 = arith.constant 0 : i32
    %c0_i32_0 = arith.constant 0 : i32
    return %arg1, %c0_i32 : i32, i32
  }
  func.func @transform_1(%arg0: i32, %arg1: i32) -> (i32, i32) {
    %c0_i32 = arith.constant 0 : i32
    %c0_i32_0 = arith.constant 0 : i32
    %c0_i32_1 = arith.constant 0 : i32
    return %c0_i32, %c0_i32_0 : i32, i32
  }
  func.func @transform_2(%arg0: i32, %arg1: i32) -> (i32, i32) {
    %c0_i32 = arith.constant 0 : i32
    %c0_i32_0 = arith.constant 0 : i32
    %c0_i32_1 = arith.constant 0 : i32
    return %c0_i32, %c0_i32_0 : i32, i32
  }
  func.func @transform_3(%arg0: i32, %arg1: i32) -> (i32, i32) {
    %c0_i32 = arith.constant 0 : i32
    %c0_i32_0 = arith.constant 0 : i32
    %c0_i32_1 = arith.constant 0 : i32
    return %c0_i32, %c0_i32_0 : i32, i32
  }
  func.func @transform_4(%arg0: i32, %arg1: i32) -> (i32, i32) {
    %c0_i32 = arith.constant 0 : i32
    %c0_i32_0 = arith.constant 0 : i32
    %c0_i32_1 = arith.constant 0 : i32
    return %c0_i32, %c0_i32_0 : i32, i32
  }
  func.func @transform_5(%arg0: i32, %arg1: i32) -> (i32, i32) {
    %c2_i32 = arith.constant 2 : i32
    %0 = arith.cmpi eq, %arg0, %c2_i32 : i32
    %c0_i32 = arith.constant 0 : i32
    %1 = arith.select %0, %arg1, %c0_i32 : i32
    %c0_i32_0 = arith.constant 0 : i32
    %c0_i32_1 = arith.constant 0 : i32
    return %1, %c0_i32_0 : i32, i32
  }
}

</mosaic_0001>

<llo_original>
// kernel: tpu_custom_call.1
$region0: #{tpu_custom_call.1}
  #allocation0 [shape = 'u32[]', space=smem, size = 0x4, offset = 0x4, fixed_abs, tag = 'smem constant byte address 0x4 - core index']
  #allocation1 [shape = 'u32[144,128]{1,0:T(1,128)}', space=vmem, size = 0x12000, scoped, tag = 'internal scratch']
  #allocation2 [shape = 'f32[1,128]{1,0:T(1,128)}', space=vmem, size = 0x200, scoped, tag = 'scratch operand']
  #allocation3 [shape = 'f32[1,128]{1,0:T(1,128)}', space=vmem, size = 0x200, scoped, tag = 'scratch operand']
  #allocation4 [shape = 'f32[1,32]{1,0:T(1,128)}', space=vmem, size = 0x200, scoped, tag = 'scratch operand']
  #allocation5 [shape = 'f32[1,32]{1,0:T(1,128)}', space=vmem, size = 0x200, scoped, tag = 'scratch operand']
  #allocation6 [shape = 'f32[1,128]{1,0:T(1,128)}', space=vmem, size = 0x200, scoped, tag = 'scratch operand']
  #allocation7 [shape = 'f32[1,128]{1,0:T(1,128)}', space=vmem, size = 0x200, scoped, tag = 'scratch operand']
  #allocation8 [shape = 'f32[1,32]{1,0:T(1,128)}', space=vmem, size = 0x200, scoped, tag = 'scratch operand']
  #allocation9 [shape = 'f32[1,32]{1,0:T(1,128)}', space=vmem, size = 0x200, scoped, tag = 'scratch operand']
  %s0 = inlined_call_operand.vmem [shape: f32[8,32], index: 0, kind: input, shape index: {}]
  %s1 = inlined_call_operand.vmem [shape: f32[32,128], index: 1, kind: input, shape index: {}]
  %s2 = inlined_call_operand.vmem [shape: f32[128,32], index: 2, kind: input, shape index: {}]
  %s3 = inlined_call_operand.vmem [shape: f32[2,128], index: 3, kind: input, shape index: {}]
  %s4 = inlined_call_operand.vmem [shape: f32[2,32], index: 4, kind: input, shape index: {}]
  %s5 = inlined_call_operand.hbm [shape: f32[8,32], index: 5, kind: output, shape index: {}]
  %s6 = sld [smem:[#allocation0]]
  $region77: #{tpu_custom_call.1} parent=0
    _
  %s8 = ssub.s32 1, %s6
  %s9 = scalar_select 0, %s8, %s6
  $region1: #{tpu_custom_call.1} parent=0
    #allocation10 [shape = 'u8[8192]{0}', space=vmem, size = 0x2000, scoped, tag = 'output window, operand 0']
    #allocation11 [shape = 's32[2]{0}', space=sflag, size = 0x8, scoped, tag = 'scoped memory for tpu_custom_call.1']
    %10 = vsyncpa [#allocation11], 0
    %s11 = scalar_lea.sflag [#allocation11], 1
    %12 = vsyncpa %s11, 0
    loop: start=0, step=1, limit=5
    $region2: #{tpu_custom_call.1} parent=1 // loop_pre_header
      _
    $region3: #{tpu_custom_call.1} parent=1 // loop_header
      %s14 = sphi 0, %s18
      %p15 = scmp.ge.s32.totalorder %s14, 5
      %s21 = sphi 0, %s33
      %s22 = sphi 0, %s29
      %s23 = sphi 0, %s21
      %s24 = sphi 0, %s22
      %s25 = sphi 0, %s23
      %s26 = sphi 0, %s24
      %s36 = sphi 0, %s38
      %s39 = sphi 0, %s36
      %s40 = sphi 0, %s39
      %s56 = sphi 0, %s40
      %s60 = sphi 0, %s60
      %s62 = sphi 0, %s60
      %s63 = sphi 0, %s62
      %s77 = sphi 0, %s63
      %s81 = sphi 0, %s81
      %s83 = sphi 0, %s81
      %s84 = sphi 0, %s83
      %s98 = sphi 0, %s84
      %s102 = sphi 0, %s102
      %s104 = sphi 0, %s102
      %s105 = sphi 0, %s104
      %s119 = sphi 0, %s105
      %s123 = sphi 0, %s123
      %s125 = sphi 0, %s123
      %s126 = sphi 0, %s125
      %s140 = sphi 0, %s126
      %s150 = sphi 0, %s152
      %s153 = sphi 0, %s150
      %s154 = sphi 0, %s153
      %s170 = sphi 0, %s154
    $region4: #{tpu_custom_call.1} parent=1 // loop_header_branch
      %17 = sbr.rel (%p15) target = $region8
    $region5: #{tpu_custom_call.1} parent=1 // loop_body
      %s19 = ssub.s32 %s14, 1
      %s20 = ssub.s32 %s14, 2
      %s27 = sadd.s32 1, %s22
      %p28 = scmp.ge.s32.totalorder %s27, 1
      %s29 = scalar_select %p28, 0, %s27
      %s30 = sadd.s32 1, %s21
      %s31 = scalar_select %p28, %s30, %s21
      %p32 = scmp.ge.s32.totalorder %s31, 3
      %s33 = scalar_select %p32, 0, %s31
      %s34 = ssub.s32 %s22, %s29
      %p35 = scmp.eq.s32.totalorder %s34, 0
      %s37 = sadd.s32 %s36, 1
      %s38 = scalar_select %p35, %s36, %s37
      %p41 = pneg %p35
      %p42 = scmp.eq.s32.totalorder %s14, 2
      %p43 = por %p41, %p42
      %p44 = scmp.ne.s32.totalorder %s36, %s39
      %p45 = scmp.eq.s32.totalorder %s14, 0
      %p46 = por %p44, %p45
      %p47 = scmp.ne.s32.totalorder %s36, %s39
      %p48 = scmp.eq.s32.totalorder %s19, 2
      %p49 = por %p47, %p48
      %p50 = scmp.ne.s32.totalorder %s39, %s40
      %p51 = scmp.eq.s32.totalorder %s19, 0
      %p52 = por %p50, %p51
      %p53 = scmp.ne.s32.totalorder %s39, %s40
      %p54 = scmp.eq.s32.totalorder %s20, 2
      %p55 = por %p53, %p54
      %p57 = scmp.ne.s32.totalorder %s40, %s56
      %p58 = scmp.eq.s32.totalorder %s20, 0
      %p59 = por %p57, %p58
      %s61 = sadd.s32 %s60, 1
      %p64 = scmp.eq.s32.totalorder %s14, 2
      %p65 = scmp.ne.s32.totalorder %s60, %s62
      %p66 = scmp.eq.s32.totalorder %s14, 0
      %p67 = por %p65, %p66
      %p68 = scmp.ne.s32.totalorder %s60, %s62
      %p69 = scmp.eq.s32.totalorder %s19, 2
      %p70 = por %p68, %p69
      %p71 = scmp.ne.s32.totalorder %s62, %s63
      %p72 = scmp.eq.s32.totalorder %s19, 0
      %p73 = por %p71, %p72
      %p74 = scmp.ne.s32.totalorder %s62, %s63
      %p75 = scmp.eq.s32.totalorder %s20, 2
      %p76 = por %p74, %p75
      %p78 = scmp.ne.s32.totalorder %s63, %s77
      %p79 = scmp.eq.s32.totalorder %s20, 0
      %p80 = por %p78, %p79
      %s82 = sadd.s32 %s81, 1
      %p85 = scmp.eq.s32.totalorder %s14, 2
      %p86 = scmp.ne.s32.totalorder %s81, %s83
      %p87 = scmp.eq.s32.totalorder %s14, 0
      %p88 = por %p86, %p87
      %p89 = scmp.ne.s32.totalorder %s81, %s83
      %p90 = scmp.eq.s32.totalorder %s19, 2
      %p91 = por %p89, %p90
      %p92 = scmp.ne.s32.totalorder %s83, %s84
      %p93 = scmp.eq.s32.totalorder %s19, 0
      %p94 = por %p92, %p93
      %p95 = scmp.ne.s32.totalorder %s83, %s84
      %p96 = scmp.eq.s32.totalorder %s20, 2
      %p97 = por %p95, %p96
      %p99 = scmp.ne.s32.totalorder %s84, %s98
      %p100 = scmp.eq.s32.totalorder %s20, 0
      %p101 = por %p99, %p100
      %s103 = sadd.s32 %s102, 1
      %p106 = scmp.eq.s32.totalorder %s14, 2
      %p107 = scmp.ne.s32.totalorder %s102, %s104
      %p108 = scmp.eq.s32.totalorder %s14, 0
      %p109 = por %p107, %p108
      %p110 = scmp.ne.s32.totalorder %s102, %s104
      %p111 = scmp.eq.s32.totalorder %s19, 2
      %p112 = por %p110, %p111
      %p113 = scmp.ne.s32.totalorder %s104, %s105
      %p114 = scmp.eq.s32.totalorder %s19, 0
      %p115 = por %p113, %p114
      %p116 = scmp.ne.s32.totalorder %s104, %s105
      %p117 = scmp.eq.s32.totalorder %s20, 2
      %p118 = por %p116, %p117
      %p120 = scmp.ne.s32.totalorder %s105, %s119
      %p121 = scmp.eq.s32.totalorder %s20, 0
      %p122 = por %p120, %p121
      %s124 = sadd.s32 %s123, 1
      %p127 = scmp.eq.s32.totalorder %s14, 2
      %p128 = scmp.ne.s32.totalorder %s123, %s125
      %p129 = scmp.eq.s32.totalorder %s14, 0
      %p130 = por %p128, %p129
      %p131 = scmp.ne.s32.totalorder %s123, %s125
      %p132 = scmp.eq.s32.totalorder %s19, 2
      %p133 = por %p131, %p132
      %p134 = scmp.ne.s32.totalorder %s125, %s126
      %p135 = scmp.eq.s32.totalorder %s19, 0
      %p136 = por %p134, %p135
      %p137 = scmp.ne.s32.totalorder %s125, %s126
      %p138 = scmp.eq.s32.totalorder %s20, 2
      %p139 = por %p137, %p138
      %p141 = scmp.ne.s32.totalorder %s126, %s140
      %p142 = scmp.eq.s32.totalorder %s20, 0
      %p143 = por %p141, %p142
      %p144 = scmp.eq.s32.totalorder %s21, 2
      %s145 = scalar_select %p144, %s22, 0
      %p146 = scmp.eq.s32.totalorder %s33, 2
      %s147 = scalar_select %p146, %s29, 0
      %s148 = ssub.s32 %s145, %s147
      %p149 = scmp.eq.s32.totalorder %s148, 0
      %s151 = sadd.s32 %s150, 1
      %s152 = scalar_select %p149, %s150, %s151
      %p155 = pneg %p149
      %p156 = scmp.eq.s32.totalorder %s14, 2
      %p157 = por %p155, %p156
      %p158 = scmp.ne.s32.totalorder %s150, %s153
      %p159 = scmp.eq.s32.totalorder %s14, 0
      %p160 = por %p158, %p159
      %p161 = scmp.ne.s32.totalorder %s150, %s153
      %p162 = scmp.eq.s32.totalorder %s19, 2
      %p163 = por %p161, %p162
      %p164 = scmp.ne.s32.totalorder %s153, %s154
      %p165 = scmp.eq.s32.totalorder %s19, 0
      %p166 = por %p164, %p165
      %p167 = scmp.ne.s32.totalorder %s153, %s154
      %p168 = scmp.eq.s32.totalorder %s20, 2
      %p169 = por %p167, %p168
      %p171 = scmp.ne.s32.totalorder %s154, %s170
      %p172 = scmp.eq.s32.totalorder %s20, 0
      %p173 = por %p171, %p172
      %p174 = scmp.le.s32.totalorder 1, %s14
      %p175 = scmp.lt.s32.totalorder %s14, 4
      %p176 = pnand %p174, %p175
      %p177 = pneg %p176
      // Predicated region
      $region9: #{tpu_custom_call.1} parent=5 // pred_check
        _
      $region10: #{tpu_custom_call.1} parent=5 // pred_check_branch
        %179 = sbr.rel (%p176) target = $region12
      $region11: #{tpu_custom_call.1} parent=5 // pred_region
        %s180 = ssub.s32 %s14, 1
        // Predicated region
        $region13: #{tpu_custom_call.1} parent=11 // pred_check
          %p181 = pneg %p52
        $region14: #{tpu_custom_call.1} parent=11 // pred_check_branch
          %183 = sbr.rel (%p181) target = $region16
        $region15: #{tpu_custom_call.1} parent=11 // pred_region
          %p184 = scmp.lt.s32.totalorder %s24, 0
          %s185 = scalar_select %p184, %s24, 0
          %s186 = smul.addr %s185, 8
          %s187 = scalar_lea.vmem %s0, %s186
        $region16: #{tpu_custom_call.1} parent=11 // pred_fallthru
          _
        // Predicated region
        $region17: #{tpu_custom_call.1} parent=11 // pred_check
          %p188 = pneg %p73
        $region18: #{tpu_custom_call.1} parent=11 // pred_check_branch
          %190 = sbr.rel (%p188) target = $region20
        $region19: #{tpu_custom_call.1} parent=11 // pred_region
          _
        $region20: #{tpu_custom_call.1} parent=11 // pred_fallthru
          _
        // Predicated region
        $region21: #{tpu_custom_call.1} parent=11 // pred_check
          %p191 = pneg %p94
        $region22: #{tpu_custom_call.1} parent=11 // pred_check_branch
          %193 = sbr.rel (%p191) target = $region24
        $region23: #{tpu_custom_call.1} parent=11 // pred_region
          _
        $region24: #{tpu_custom_call.1} parent=11 // pred_fallthru
          _
        // Predicated region
        $region25: #{tpu_custom_call.1} parent=11 // pred_check
          %p194 = pneg %p115
        $region26: #{tpu_custom_call.1} parent=11 // pred_check_branch
          %196 = sbr.rel (%p194) target = $region28
        $region27: #{tpu_custom_call.1} parent=11 // pred_region
          _
        $region28: #{tpu_custom_call.1} parent=11 // pred_fallthru
          _
        // Predicated region
        $region29: #{tpu_custom_call.1} parent=11 // pred_check
          %p197 = pneg %p136
        $region30: #{tpu_custom_call.1} parent=11 // pred_check_branch
          %199 = sbr.rel (%p197) target = $region32
        $region31: #{tpu_custom_call.1} parent=11 // pred_region
          _
        $region32: #{tpu_custom_call.1} parent=11 // pred_fallthru
          _
      $region12: #{tpu_custom_call.1} parent=5 // pred_fallthru
        _
      %p200 = scmp.lt.s32.totalorder %s14, 3
      // Predicated region
      $region33: #{tpu_custom_call.1} parent=5 // pred_check
        %p201 = pneg %p200
      $region34: #{tpu_custom_call.1} parent=5 // pred_check_branch
        %203 = sbr.rel (%p201) target = $region36
      $region35: #{tpu_custom_call.1} parent=5 // pred_region
        _
      $region36: #{tpu_custom_call.1} parent=5 // pred_fallthru
        _
      %p204 = scmp.le.s32.totalorder 1, %s14
      %p205 = scmp.lt.s32.totalorder %s14, 4
      %p206 = pnand %p204, %p205
      %p207 = pneg %p206
      // Predicated region
      $region37: #{tpu_custom_call.1} parent=5 // pred_check
        _
      $region38: #{tpu_custom_call.1} parent=5 // pred_check_branch
        %209 = sbr.rel (%p206) target = $region40
      $region39: #{tpu_custom_call.1} parent=5 // pred_region
        %s210 = ssub.s32 %s14, 1
        %p211 = scmp.lt.s32.totalorder %s24, 0
        %s212 = scalar_select %p211, %s24, 0
        %s213 = smul.addr %s212, 8
        %s214 = scalar_lea.vmem %s0, %s213
        %p215 = pneg %p52
        %p216 = pneg %p49
        %p217 = pneg %p73
        %p218 = pneg %p70
        %p219 = pneg %p94
        %p220 = pneg %p91
        %p221 = pneg %p115
        %p222 = pneg %p112
        %p223 = pneg %p136
        %p224 = pneg %p133
        %p225 = pneg %p166
        %p226 = pneg %p163
        %s227 = sand.u32 %s153, 1
        %s228 = scalar_lea.sflag [#allocation11], %s227
        %s229 = sand.u32 %s153, 1
        %s230 = smul.addr %s229, 8
        %s231 = scalar_lea.vmem [#allocation10], %s230
        %p232 = scmp.lt.s32.totalorder %s24, 0
        %s233 = scalar_select %p232, %s24, 0
        %s234 = smul.addr %s233, 8
        %s235 = scalar_lea.vmem %s0, %s234
        %p236 = scmp.eq.s32.totalorder %s23, 2
        %s237 = scalar_select %p236, %s24, 0
        %v238 = vld [vmem:[%s235] sm:$0xff]
        %p239 = scmp.eq.s32.totalorder %s23, 0
        // Predicated region
        $region41: #{tpu_custom_call.1} parent=39 // pred_check
          %p240 = pneg %p239
        $region42: #{tpu_custom_call.1} parent=39 // pred_check_branch
          %242 = sbr.rel (%p240) target = $region44
        $region43: #{tpu_custom_call.1} parent=39 // pred_region
          %p243 = scmp.eq.s32.totalorder %s24, 0
          // Predicated region
          $region45: #{tpu_custom_call.1} parent=43 // pred_check
            %p244 = pneg %p243
          $region46: #{tpu_custom_call.1} parent=43 // pred_check_branch
            %246 = sbr.rel (%p244) target = $region48
          $region47: #{tpu_custom_call.1} parent=43 // pred_region
            %247 = vst [vmem:[#allocation2] sm:$0x1] 0.0
            %248 = vst [vmem:[#allocation3] sm:$0x1] 0.0
          $region48: #{tpu_custom_call.1} parent=43 // pred_fallthru
            _
          %v249 = vld [vmem:[%s1] sm:$0xff]
          %v250 = vld [vmem:[%s1 + $0x8] sm:$0xff]
          %v251 = vld [vmem:[%s1 + $0x10] sm:$0xff]
          %v252 = vld [vmem:[%s1 + $0x18] sm:$0xff]
          %vm253 = vcmask 261120
          %v255 = vsel %vm253, %v238, 0
          %257 = vmatprep.subr.mxu0 0.0
          %258 = vmatpush1.msra.mxu0 0.0
          %259 = vmatprep.subr.mxu0 0.0
          %260 = vmatpush1.msra.mxu0 0.0
          %261 = vmatprep.subr.mxu0 0.0
          %262 = vmatpush1.msra.mxu0 0.0
          %263 = vmatprep.subr.mxu0 0.0
          %264 = vmatpush1.msra.mxu0 0.0
          %265 = vmatprep.subr.mxu0 0.0
          %266 = vmatpush1.msra.mxu0 0.0
          %267 = vmatprep.subr.mxu0 0.0
          %268 = vmatpush1.msra.mxu0 0.0
          %269 = vmatprep.subr.mxu0 0.0
          %270 = vmatpush1.msra.mxu0 0.0
          %271 = vmatprep.subr.mxu0 0.0
          %272 = vmatpush1.msra.mxu0 0.0
          %273 = vmatprep.subr.mxu0 0.0
          %274 = vmatpush1.msra.mxu0 0.0
          %275 = vmatprep.subr.mxu0 0.0
          %276 = vmatpush1.msra.mxu0 0.0
          %277 = vmatprep.subr.mxu0 0.0
          %278 = vmatpush1.msra.mxu0 0.0
          %279 = vmatprep.subr.mxu0 0.0
          %280 = vmatpush1.msra.mxu0 0.0
          %281 = vmatprep.subr.mxu0 0.0
          %282 = vmatpush1.msra.mxu0 %v252
          %283 = vmatprep.subr.mxu0 0.0
          %284 = vmatpush1.msra.mxu0 %v251
          %285 = vmatprep.subr.mxu0 0.0
          %286 = vmatpush1.msra.mxu0 %v250
          %287 = vmatprep.subr.mxu0 0.0
          %288 = vmatpush1.msra.mxu0 %v249
          %289 = vmatprep.subr.mxu0 0.0
          %290 = vmatpush2.msra.mxu0 0.0
          %291 = vmatprep.subr.mxu0 0.0
          %292 = vmatpush2.msra.mxu0 0.0
          %293 = vmatprep.subr.mxu0 0.0
          %294 = vmatpush2.msra.mxu0 0.0
          %295 = vmatprep.subr.mxu0 0.0
          %296 = vmatpush2.msra.mxu0 0.0
          %297 = vmatprep.subr.mxu0 0.0
          %298 = vmatpush2.msra.mxu0 0.0
          %299 = vmatprep.subr.mxu0 0.0
          %300 = vmatpush2.msra.mxu0 0.0
          %301 = vmatprep.subr.mxu0 0.0
          %302 = vmatpush2.msra.mxu0 0.0
          %303 = vmatprep.subr.mxu0 0.0
          %304 = vmatpush2.msra.mxu0 0.0
          %305 = vmatprep.subr.mxu0 0.0
          %306 = vmatpush2.msra.mxu0 0.0
          %307 = vmatprep.subr.mxu0 0.0
          %308 = vmatpush2.msra.mxu0 0.0
          %309 = vmatprep.subr.mxu0 0.0
          %310 = vmatpush2.msra.mxu0 0.0
          %311 = vmatprep.subr.mxu0 0.0
          %312 = vmatpush2.msra.mxu0 0.0
          %313 = vmatprep.subr.mxu0 0.0
          %314 = vmatpush2.msra.mxu0 0.0
          %315 = vmatprep.subr.mxu0 0.0
          %316 = vmatpush2.msra.mxu0 0.0
          %317 = vmatprep.subr.mxu0 0.0
          %318 = vmatpush2.msra.mxu0 0.0
          %319 = vmatprep.subr.mxu0 0.0
          %320 = vmatpush2.msra.mxu0 0.0
          %321 = vmatprep.mubr.f32.mxu0 0.0
          %322 = vmatmul.mubr.f32.gmra.mxu0 %v255
          %v323 = vpop.f32.mrf.mxu0
          %v324 = vadd.f32 0.0, %v323
          %v325 = vpop.f32.mrf.mxu0
          %326 = vdwg.mxu0
          %v327 = vld [vmem:[#allocation2] sm:$0x1]
          %v328 = vrot.slane %v324, 4
          %v329 = vadd.f32 %v324, %v328
          %v330 = vrot.slane %v329, 2
          %v331 = vadd.f32 %v329, %v330
          %v332 = vrot.slane %v331, 1
          %v333 = vadd.f32 %v331, %v332
          %v334 = vadd.f32 %v327, %v333
          %335 = vst [vmem:[#allocation2] sm:$0x1] %v334
          %v336 = vld [vmem:[#allocation3] sm:$0x1]
          %v337 = vmul.f32 %v324, %v324
          %v338 = vrot.slane %v337, 4
          %v339 = vadd.f32 %v337, %v338
          %v340 = vrot.slane %v339, 2
          %v341 = vadd.f32 %v339, %v340
          %v342 = vrot.slane %v341, 1
          %v343 = vadd.f32 %v341, %v342
          %v344 = vadd.f32 %v336, %v343
          %345 = vst [vmem:[#allocation3] sm:$0x1] %v344
        $region44: #{tpu_custom_call.1} parent=39 // pred_fallthru
          _
        %p346 = scmp.eq.s32.totalorder %s23, 1
        %p347 = scmp.eq.s32.totalorder %s24, 0
        %p348 = pnand %p346, %p347
        %p349 = pneg %p348
        // Predicated region
        $region49: #{tpu_custom_call.1} parent=39 // pred_check
          _
        $region50: #{tpu_custom_call.1} parent=39 // pred_check_branch
          %351 = sbr.rel (%p348) target = $region52
        $region51: #{tpu_custom_call.1} parent=39 // pred_region
          %v352 = vld [vmem:[#allocation2] sm:$0x1]
          %v353 = vmul.f32 %v352, 0.125
          %v354 = vld [vmem:[#allocation3] sm:$0x1]
          %v355 = vmul.f32 %v354, 0.125
          %v356 = vmul.f32 %v353, %v353
          %v357 = vsub.f32 %v355, %v356
          %v358 = vmax.f32 %v357, 0.0
          %v359 = vld [vmem:[%s3] sm:$0x1]
          %v360 = vadd.f32 %v358, 1e-05
          %v361 = vrsqrt.pop %v360
          %v362 = vmul.f32 %v359, %v361
          %363 = vst [vmem:[#allocation6] sm:$0x1] %v362
          %v364 = vld [vmem:[%s3 + $0x1] sm:$0x1]
          %v365 = vmul.f32 %v353, %v362
          %v366 = vsub.f32 %v364, %v365
          %367 = vst [vmem:[#allocation7] sm:$0x1] %v366
          %vm368 = vcmask 253952
          %369 = vst.msk [vmem:[#allocation4] sm:$0x1] %vm368, 0.0
          %370 = vst.msk [vmem:[#allocation5] sm:$0x1] %vm368, 0.0
        $region52: #{tpu_custom_call.1} parent=39 // pred_fallthru
          _
        // Predicated region
        $region53: #{tpu_custom_call.1} parent=39 // pred_check
          %p371 = pneg %p346
        $region54: #{tpu_custom_call.1} parent=39 // pred_check_branch
          %373 = sbr.rel (%p371) target = $region56
        $region55: #{tpu_custom_call.1} parent=39 // pred_region
          %v374 = vld [vmem:[%s1] sm:$0xff]
          %v375 = vld [vmem:[%s1 + $0x8] sm:$0xff]
          %v376 = vld [vmem:[%s1 + $0x10] sm:$0xff]
          %v377 = vld [vmem:[%s1 + $0x18] sm:$0xff]
          %vm378 = vcmask 261120
          %v380 = vsel %vm378, %v238, 0
          %382 = vmatprep.subr.mxu0 0.0
          %383 = vmatpush1.msra.mxu0 0.0
          %384 = vmatprep.subr.mxu0 0.0
          %385 = vmatpush1.msra.mxu0 0.0
          %386 = vmatprep.subr.mxu0 0.0
          %387 = vmatpush1.msra.mxu0 0.0
          %388 = vmatprep.subr.mxu0 0.0
          %389 = vmatpush1.msra.mxu0 0.0
          %390 = vmatprep.subr.mxu0 0.0
          %391 = vmatpush1.msra.mxu0 0.0
          %392 = vmatprep.subr.mxu0 0.0
          %393 = vmatpush1.msra.mxu0 0.0
          %394 = vmatprep.subr.mxu0 0.0
          %395 = vmatpush1.msra.mxu0 0.0
          %396 = vmatprep.subr.mxu0 0.0
          %397 = vmatpush1.msra.mxu0 0.0
          %398 = vmatprep.subr.mxu0 0.0
          %399 = vmatpush1.msra.mxu0 0.0
          %400 = vmatprep.subr.mxu0 0.0
          %401 = vmatpush1.msra.mxu0 0.0
          %402 = vmatprep.subr.mxu0 0.0
          %403 = vmatpush1.msra.mxu0 0.0
          %404 = vmatprep.subr.mxu0 0.0
          %405 = vmatpush1.msra.mxu0 0.0
          %406 = vmatprep.subr.mxu0 0.0
          %407 = vmatpush1.msra.mxu0 %v377
          %408 = vmatprep.subr.mxu0 0.0
          %409 = vmatpush1.msra.mxu0 %v376
          %410 = vmatprep.subr.mxu0 0.0
          %411 = vmatpush1.msra.mxu0 %v375
          %412 = vmatprep.subr.mxu0 0.0
          %413 = vmatpush1.msra.mxu0 %v374
          %414 = vmatprep.subr.mxu0 0.0
          %415 = vmatpush2.msra.mxu0 0.0
          %416 = vmatprep.subr.mxu0 0.0
          %417 = vmatpush2.msra.mxu0 0.0
          %418 = vmatprep.subr.mxu0 0.0
          %419 = vmatpush2.msra.mxu0 0.0
          %420 = vmatprep.subr.mxu0 0.0
          %421 = vmatpush2.msra.mxu0 0.0
          %422 = vmatprep.subr.mxu0 0.0
          %423 = vmatpush2.msra.mxu0 0.0
          %424 = vmatprep.subr.mxu0 0.0
          %425 = vmatpush2.msra.mxu0 0.0
          %426 = vmatprep.subr.mxu0 0.0
          %427 = vmatpush2.msra.mxu0 0.0
          %428 = vmatprep.subr.mxu0 0.0
          %429 = vmatpush2.msra.mxu0 0.0
          %430 = vmatprep.subr.mxu0 0.0
          %431 = vmatpush2.msra.mxu0 0.0
          %432 = vmatprep.subr.mxu0 0.0
          %433 = vmatpush2.msra.mxu0 0.0
          %434 = vmatprep.subr.mxu0 0.0
          %435 = vmatpush2.msra.mxu0 0.0
          %436 = vmatprep.subr.mxu0 0.0
          %437 = vmatpush2.msra.mxu0 0.0
          %438 = vmatprep.subr.mxu0 0.0
          %439 = vmatpush2.msra.mxu0 0.0
          %440 = vmatprep.subr.mxu0 0.0
          %441 = vmatpush2.msra.mxu0 0.0
          %442 = vmatprep.subr.mxu0 0.0
          %443 = vmatpush2.msra.mxu0 0.0
          %444 = vmatprep.subr.mxu0 0.0
          %445 = vmatpush2.msra.mxu0 0.0
          %446 = vmatprep.mubr.f32.mxu0 0.0
          %447 = vmatmul.mubr.f32.gmra.mxu0 %v380
          %v448 = vpop.f32.mrf.mxu0
          %v449 = vadd.f32 0.0, %v448
          %v450 = vpop.f32.mrf.mxu0
          %451 = vdwg.mxu0
          %v452 = vld [vmem:[#allocation6] sm:$0x1]
          %v454 = vlaneseq
          %v455 = vshrl.u32 %v454, 7
          %v456 = vsub.s32 0, %v455
          %v457 = vrot.slane %v452, %v456
          %v459 = vmul.f32 %v449, %v457
          %v460 = vld [vmem:[#allocation7] sm:$0x1]
          %v462 = vlaneseq
          %v463 = vshrl.u32 %v462, 7
          %v464 = vsub.s32 0, %v463
          %v465 = vrot.slane %v460, %v464
          %v467 = vadd.f32 %v459, %v465
          %v468 = vmax.f32 %v467, 0.0
          %v469 = vld [vmem:[%s2] sm:$0xff]
          %v470 = vld [vmem:[%s2 + $0x8] sm:$0xff]
          %v471 = vld [vmem:[%s2 + $0x10] sm:$0xff]
          %v472 = vld [vmem:[%s2 + $0x18] sm:$0xff]
          %v473 = vld [vmem:[%s2 + $0x20] sm:$0xff]
          %v474 = vld [vmem:[%s2 + $0x28] sm:$0xff]
          %v475 = vld [vmem:[%s2 + $0x30] sm:$0xff]
          %v476 = vld [vmem:[%s2 + $0x38] sm:$0xff]
          %v477 = vld [vmem:[%s2 + $0x40] sm:$0xff]
          %v478 = vld [vmem:[%s2 + $0x48] sm:$0xff]
          %v479 = vld [vmem:[%s2 + $0x50] sm:$0xff]
          %v480 = vld [vmem:[%s2 + $0x58] sm:$0xff]
          %v481 = vld [vmem:[%s2 + $0x60] sm:$0xff]
          %v482 = vld [vmem:[%s2 + $0x68] sm:$0xff]
          %v483 = vld [vmem:[%s2 + $0x70] sm:$0xff]
          %v484 = vld [vmem:[%s2 + $0x78] sm:$0xff]
          %485 = vmatprep.subr.mxu0 0.0
          %486 = vmatpush1.msra.mxu0 %v484
          %487 = vmatprep.subr.mxu0 0.0
          %488 = vmatpush1.msra.mxu0 %v483
          %489 = vmatprep.subr.mxu0 0.0
          %490 = vmatpush1.msra.mxu0 %v482
          %491 = vmatprep.subr.mxu0 0.0
          %492 = vmatpush1.msra.mxu0 %v481
          %493 = vmatprep.subr.mxu0 0.0
          %494 = vmatpush1.msra.mxu0 %v480
          %495 = vmatprep.subr.mxu0 0.0
          %496 = vmatpush1.msra.mxu0 %v479
          %497 = vmatprep.subr.mxu0 0.0
          %498 = vmatpush1.msra.mxu0 %v478
          %499 = vmatprep.subr.mxu0 0.0
          %500 = vmatpush1.msra.mxu0 %v477
          %501 = vmatprep.subr.mxu0 0.0
          %502 = vmatpush1.msra.mxu0 %v476
          %503 = vmatprep.subr.mxu0 0.0
          %504 = vmatpush1.msra.mxu0 %v475
          %505 = vmatprep.subr.mxu0 0.0
          %506 = vmatpush1.msra.mxu0 %v474
          %507 = vmatprep.subr.mxu0 0.0
          %508 = vmatpush1.msra.mxu0 %v473
          %509 = vmatprep.subr.mxu0 0.0
          %510 = vmatpush1.msra.mxu0 %v472
          %511 = vmatprep.subr.mxu0 0.0
          %512 = vmatpush1.msra.mxu0 %v471
          %513 = vmatprep.subr.mxu0 0.0
          %514 = vmatpush1.msra.mxu0 %v470
          %515 = vmatprep.subr.mxu0 0.0
          %516 = vmatpush1.msra.mxu0 %v469
          %517 = vmatprep.subr.mxu0 0.0
          %518 = vmatpush2.msra.mxu0 0.0
          %519 = vmatprep.subr.mxu0 0.0
          %520 = vmatpush2.msra.mxu0 0.0
          %521 = vmatprep.subr.mxu0 0.0
          %522 = vmatpush2.msra.mxu0 0.0
          %523 = vmatprep.subr.mxu0 0.0
          %524 = vmatpush2.msra.mxu0 0.0
          %525 = vmatprep.subr.mxu0 0.0
          %526 = vmatpush2.msra.mxu0 0.0
          %527 = vmatprep.subr.mxu0 0.0
          %528 = vmatpush2.msra.mxu0 0.0
          %529 = vmatprep.subr.mxu0 0.0
          %530 = vmatpush2.msra.mxu0 0.0
          %531 = vmatprep.subr.mxu0 0.0
          %532 = vmatpush2.msra.mxu0 0.0
          %533 = vmatprep.subr.mxu0 0.0
          %534 = vmatpush2.msra.mxu0 0.0
          %535 = vmatprep.subr.mxu0 0.0
          %536 = vmatpush2.msra.mxu0 0.0
          %537 = vmatprep.subr.mxu0 0.0
          %538 = vmatpush2.msra.mxu0 0.0
          %539 = vmatprep.subr.mxu0 0.0
          %540 = vmatpush2.msra.mxu0 0.0
          %541 = vmatprep.subr.mxu0 0.0
          %542 = vmatpush2.msra.mxu0 0.0
          %543 = vmatprep.subr.mxu0 0.0
          %544 = vmatpush2.msra.mxu0 0.0
          %545 = vmatprep.subr.mxu0 0.0
          %546 = vmatpush2.msra.mxu0 0.0
          %547 = vmatprep.subr.mxu0 0.0
          %548 = vmatpush2.msra.mxu0 0.0
          %549 = vmatprep.mubr.f32.mxu0 0.0
          %550 = vmatmul.mubr.f32.gmra.mxu0 %v468
          %v551 = vpop.f32.mrf.mxu0
          %v552 = vadd.f32 0.0, %v551
          %v553 = vpop.f32.mrf.mxu0
          %554 = vdwg.mxu0
          %v555 = vld [vmem:[#allocation4] sm:$0x1]
          %v556 = vsel %vm378, %v552, 0.0
          %v557 = vrot.slane %v556, 4
          %v558 = vadd.f32 %v556, %v557
          %v559 = vrot.slane %v558, 2
          %v560 = vadd.f32 %v558, %v559
          %v561 = vrot.slane %v560, 1
          %v562 = vadd.f32 %v560, %v561
          %v563 = vadd.f32 %v555, %v562
          %vm564 = vcmask 253952
          %565 = vst.msk [vmem:[#allocation4] sm:$0x1] %vm564, %v563
          %v566 = vld [vmem:[#allocation5] sm:$0x1]
          %v567 = vmul.f32 %v552, %v552
          %v568 = vsel %vm378, %v567, 0.0
          %v569 = vrot.slane %v568, 4
          %v570 = vadd.f32 %v568, %v569
          %v571 = vrot.slane %v570, 2
          %v572 = vadd.f32 %v570, %v571
          %v573 = vrot.slane %v572, 1
          %v574 = vadd.f32 %v572, %v573
          %v575 = vadd.f32 %v566, %v574
          %576 = vst.msk [vmem:[#allocation5] sm:$0x1] %vm564, %v575
        $region56: #{tpu_custom_call.1} parent=39 // pred_fallthru
          _
        %p577 = scmp.eq.s32.totalorder %s23, 2
        %p578 = pnand %p577, %p347
        %p579 = pneg %p578
        // Predicated region
        $region57: #{tpu_custom_call.1} parent=39 // pred_check
          _
        $region58: #{tpu_custom_call.1} parent=39 // pred_check_branch
          %581 = sbr.rel (%p578) target = $region60
        $region59: #{tpu_custom_call.1} parent=39 // pred_region
          %v582 = vld [vmem:[#allocation4] sm:$0x1]
          %v583 = vmul.f32 %v582, 0.125
          %v584 = vld [vmem:[#allocation5] sm:$0x1]
          %v585 = vmul.f32 %v584, 0.125
          %v586 = vmul.f32 %v583, %v583
          %v587 = vsub.f32 %v585, %v586
          %v588 = vmax.f32 %v587, 0.0
          %v589 = vld [vmem:[%s4] sm:$0x1]
          %v590 = vadd.f32 %v588, 1e-05
          %v591 = vrsqrt.pop %v590
          %v592 = vmul.f32 %v589, %v591
          %vm593 = vcmask 253952
          %594 = vst.msk [vmem:[#allocation8] sm:$0x1] %vm593, %v592
          %v595 = vld [vmem:[%s4 + $0x1] sm:$0x1]
          %v596 = vmul.f32 %v583, %v592
          %v597 = vsub.f32 %v595, %v596
          %598 = vst.msk [vmem:[#allocation9] sm:$0x1] %vm593, %v597
        $region60: #{tpu_custom_call.1} parent=39 // pred_fallthru
          _
        // Predicated region
        $region61: #{tpu_custom_call.1} parent=39 // pred_check
          %p599 = pneg %p577
        $region62: #{tpu_custom_call.1} parent=39 // pred_check_branch
          %601 = sbr.rel (%p599) target = $region64
        $region63: #{tpu_custom_call.1} parent=39 // pred_region
          %v602 = vld [vmem:[%s1] sm:$0xff]
          %v603 = vld [vmem:[%s1 + $0x8] sm:$0xff]
          %v604 = vld [vmem:[%s1 + $0x10] sm:$0xff]
          %v605 = vld [vmem:[%s1 + $0x18] sm:$0xff]
          %vm606 = vcmask 261120
          %v608 = vsel %vm606, %v238, 0
          %610 = vmatprep.subr.mxu0 0.0
          %611 = vmatpush1.msra.mxu0 0.0
          %612 = vmatprep.subr.mxu0 0.0
          %613 = vmatpush1.msra.mxu0 0.0
          %614 = vmatprep.subr.mxu0 0.0
          %615 = vmatpush1.msra.mxu0 0.0
          %616 = vmatprep.subr.mxu0 0.0
          %617 = vmatpush1.msra.mxu0 0.0
          %618 = vmatprep.subr.mxu0 0.0
          %619 = vmatpush1.msra.mxu0 0.0
          %620 = vmatprep.subr.mxu0 0.0
          %621 = vmatpush1.msra.mxu0 0.0
          %622 = vmatprep.subr.mxu0 0.0
          %623 = vmatpush1.msra.mxu0 0.0
          %624 = vmatprep.subr.mxu0 0.0
          %625 = vmatpush1.msra.mxu0 0.0
          %626 = vmatprep.subr.mxu0 0.0
          %627 = vmatpush1.msra.mxu0 0.0
          %628 = vmatprep.subr.mxu0 0.0
          %629 = vmatpush1.msra.mxu0 0.0
          %630 = vmatprep.subr.mxu0 0.0
          %631 = vmatpush1.msra.mxu0 0.0
          %632 = vmatprep.subr.mxu0 0.0
          %633 = vmatpush1.msra.mxu0 0.0
          %634 = vmatprep.subr.mxu0 0.0
          %635 = vmatpush1.msra.mxu0 %v605
          %636 = vmatprep.subr.mxu0 0.0
          %637 = vmatpush1.msra.mxu0 %v604
          %638 = vmatprep.subr.mxu0 0.0
          %639 = vmatpush1.msra.mxu0 %v603
          %640 = vmatprep.subr.mxu0 0.0
          %641 = vmatpush1.msra.mxu0 %v602
          %642 = vmatprep.subr.mxu0 0.0
          %643 = vmatpush2.msra.mxu0 0.0
          %644 = vmatprep.subr.mxu0 0.0
          %645 = vmatpush2.msra.mxu0 0.0
          %646 = vmatprep.subr.mxu0 0.0
          %647 = vmatpush2.msra.mxu0 0.0
          %648 = vmatprep.subr.mxu0 0.0
          %649 = vmatpush2.msra.mxu0 0.0
          %650 = vmatprep.subr.mxu0 0.0
          %651 = vmatpush2.msra.mxu0 0.0
          %652 = vmatprep.subr.mxu0 0.0
          %653 = vmatpush2.msra.mxu0 0.0
          %654 = vmatprep.subr.mxu0 0.0
          %655 = vmatpush2.msra.mxu0 0.0
          %656 = vmatprep.subr.mxu0 0.0
          %657 = vmatpush2.msra.mxu0 0.0
          %658 = vmatprep.subr.mxu0 0.0
          %659 = vmatpush2.msra.mxu0 0.0
          %660 = vmatprep.subr.mxu0 0.0
          %661 = vmatpush2.msra.mxu0 0.0
          %662 = vmatprep.subr.mxu0 0.0
          %663 = vmatpush2.msra.mxu0 0.0
          %664 = vmatprep.subr.mxu0 0.0
          %665 = vmatpush2.msra.mxu0 0.0
          %666 = vmatprep.subr.mxu0 0.0
          %667 = vmatpush2.msra.mxu0 0.0
          %668 = vmatprep.subr.mxu0 0.0
          %669 = vmatpush2.msra.mxu0 0.0
          %670 = vmatprep.subr.mxu0 0.0
          %671 = vmatpush2.msra.mxu0 0.0
          %672 = vmatprep.subr.mxu0 0.0
          %673 = vmatpush2.msra.mxu0 0.0
          %674 = vmatprep.mubr.f32.mxu0 0.0
          %675 = vmatmul.mubr.f32.gmra.mxu0 %v608
          %v676 = vpop.f32.mrf.mxu0
          %v677 = vadd.f32 0.0, %v676
          %v678 = vpop.f32.mrf.mxu0
          %679 = vdwg.mxu0
          %v680 = vld [vmem:[#allocation6] sm:$0x1]
          %v682 = vlaneseq
          %v683 = vshrl.u32 %v682, 7
          %v684 = vsub.s32 0, %v683
          %v685 = vrot.slane %v680, %v684
          %v687 = vmul.f32 %v677, %v685
          %v688 = vld [vmem:[#allocation7] sm:$0x1]
          %v690 = vlaneseq
          %v691 = vshrl.u32 %v690, 7
          %v692 = vsub.s32 0, %v691
          %v693 = vrot.slane %v688, %v692
          %v695 = vadd.f32 %v687, %v693
          %v696 = vmax.f32 %v695, 0.0
          %v697 = vld [vmem:[%s2] sm:$0xff]
          %v698 = vld [vmem:[%s2 + $0x8] sm:$0xff]
          %v699 = vld [vmem:[%s2 + $0x10] sm:$0xff]
          %v700 = vld [vmem:[%s2 + $0x18] sm:$0xff]
          %v701 = vld [vmem:[%s2 + $0x20] sm:$0xff]
          %v702 = vld [vmem:[%s2 + $0x28] sm:$0xff]
          %v703 = vld [vmem:[%s2 + $0x30] sm:$0xff]
          %v704 = vld [vmem:[%s2 + $0x38] sm:$0xff]
          %v705 = vld [vmem:[%s2 + $0x40] sm:$0xff]
          %v706 = vld [vmem:[%s2 + $0x48] sm:$0xff]
          %v707 = vld [vmem:[%s2 + $0x50] sm:$0xff]
          %v708 = vld [vmem:[%s2 + $0x58] sm:$0xff]
          %v709 = vld [vmem:[%s2 + $0x60] sm:$0xff]
          %v710 = vld [vmem:[%s2 + $0x68] sm:$0xff]
          %v711 = vld [vmem:[%s2 + $0x70] sm:$0xff]
          %v712 = vld [vmem:[%s2 + $0x78] sm:$0xff]
          %713 = vmatprep.subr.mxu0 0.0
          %714 = vmatpush1.msra.mxu0 %v712
          %715 = vmatprep.subr.mxu0 0.0
          %716 = vmatpush1.msra.mxu0 %v711
          %717 = vmatprep.subr.mxu0 0.0
          %718 = vmatpush1.msra.mxu0 %v710
          %719 = vmatprep.subr.mxu0 0.0
          %720 = vmatpush1.msra.mxu0 %v709
          %721 = vmatprep.subr.mxu0 0.0
          %722 = vmatpush1.msra.mxu0 %v708
          %723 = vmatprep.subr.mxu0 0.0
          %724 = vmatpush1.msra.mxu0 %v707
          %725 = vmatprep.subr.mxu0 0.0
          %726 = vmatpush1.msra.mxu0 %v706
          %727 = vmatprep.subr.mxu0 0.0
          %728 = vmatpush1.msra.mxu0 %v705
          %729 = vmatprep.subr.mxu0 0.0
          %730 = vmatpush1.msra.mxu0 %v704
          %731 = vmatprep.subr.mxu0 0.0
          %732 = vmatpush1.msra.mxu0 %v703
          %733 = vmatprep.subr.mxu0 0.0
          %734 = vmatpush1.msra.mxu0 %v702
          %735 = vmatprep.subr.mxu0 0.0
          %736 = vmatpush1.msra.mxu0 %v701
          %737 = vmatprep.subr.mxu0 0.0
          %738 = vmatpush1.msra.mxu0 %v700
          %739 = vmatprep.subr.mxu0 0.0
          %740 = vmatpush1.msra.mxu0 %v699
          %741 = vmatprep.subr.mxu0 0.0
          %742 = vmatpush1.msra.mxu0 %v698
          %743 = vmatprep.subr.mxu0 0.0
          %744 = vmatpush1.msra.mxu0 %v697
          %745 = vmatprep.subr.mxu0 0.0
          %746 = vmatpush2.msra.mxu0 0.0
          %747 = vmatprep.subr.mxu0 0.0
          %748 = vmatpush2.msra.mxu0 0.0
          %749 = vmatprep.subr.mxu0 0.0
          %750 = vmatpush2.msra.mxu0 0.0
          %751 = vmatprep.subr.mxu0 0.0
          %752 = vmatpush2.msra.mxu0 0.0
          %753 = vmatprep.subr.mxu0 0.0
          %754 = vmatpush2.msra.mxu0 0.0
          %755 = vmatprep.subr.mxu0 0.0
          %756 = vmatpush2.msra.mxu0 0.0
          %757 = vmatprep.subr.mxu0 0.0
          %758 = vmatpush2.msra.mxu0 0.0
          %759 = vmatprep.subr.mxu0 0.0
          %760 = vmatpush2.msra.mxu0 0.0
          %761 = vmatprep.subr.mxu0 0.0
          %762 = vmatpush2.msra.mxu0 0.0
          %763 = vmatprep.subr.mxu0 0.0
          %764 = vmatpush2.msra.mxu0 0.0
          %765 = vmatprep.subr.mxu0 0.0
          %766 = vmatpush2.msra.mxu0 0.0
          %767 = vmatprep.subr.mxu0 0.0
          %768 = vmatpush2.msra.mxu0 0.0
          %769 = vmatprep.subr.mxu0 0.0
          %770 = vmatpush2.msra.mxu0 0.0
          %771 = vmatprep.subr.mxu0 0.0
          %772 = vmatpush2.msra.mxu0 0.0
          %773 = vmatprep.subr.mxu0 0.0
          %774 = vmatpush2.msra.mxu0 0.0
          %775 = vmatprep.subr.mxu0 0.0
          %776 = vmatpush2.msra.mxu0 0.0
          %777 = vmatprep.mubr.f32.mxu0 0.0
          %778 = vmatmul.mubr.f32.gmra.mxu0 %v696
          %v779 = vpop.f32.mrf.mxu0
          %v780 = vadd.f32 0.0, %v779
          %v781 = vpop.f32.mrf.mxu0
          %782 = vdwg.mxu0
          %v783 = vld [vmem:[#allocation8] sm:$0x1]
          %v785 = vlaneseq
          %v786 = vshrl.u32 %v785, 7
          %v787 = vsub.s32 0, %v786
          %v788 = vrot.slane %v783, %v787
          %v790 = vmul.f32 %v780, %v788
          %v791 = vld [vmem:[#allocation9] sm:$0x1]
          %v793 = vlaneseq
          %v794 = vshrl.u32 %v793, 7
          %v795 = vsub.s32 0, %v794
          %v796 = vrot.slane %v791, %v795
          %v798 = vadd.f32 %v790, %v796
          %v799 = vadd.f32 %v238, %v798
          %v800 = vmax.f32 %v799, 0.0
          %801 = vst.msk [vmem:[%s231] sm:$0xff] %vm606, %v800
        $region64: #{tpu_custom_call.1} parent=39 // pred_fallthru
          _
        %s802 = sand.u32 %s153, 1
        %s803 = scalar_lea.sflag [#allocation11], %s802
        %s804 = sand.u32 %s153, 1
        %s805 = smul.addr %s804, 8
        %s806 = scalar_lea.vmem [#allocation10], %s805
        // Predicated region
        $region65: #{tpu_custom_call.1} parent=39 // pred_check
          %p807 = pneg %p163
        $region66: #{tpu_custom_call.1} parent=39 // pred_check_branch
          %809 = sbr.rel (%p807) target = $region68
        $region67: #{tpu_custom_call.1} parent=39 // pred_region
          %p810 = scmp.eq.s32.totalorder %s23, 2
          %s811 = scalar_select %p810, %s24, 0
          %s813 = ssub.s32 128, 128
          %814 = vsyncadd %s803, %s813
          %s815 = smul.addr %s811, 128
          %s816 = scalar_lea.hbm %s5, %s815
          %s818 = sshll.u32 %s806, 4
          %s819 = int_to_ptr.vmem [resolvable:$true] %s818
          %821 = dma.vmem_to_hbm [thread:$0]  %s819, 128, %s816, %s803
        $region68: #{tpu_custom_call.1} parent=39 // pred_fallthru
          _
      $region40: #{tpu_custom_call.1} parent=5 // pred_fallthru
        _
      %p822 = scmp.le.s32.totalorder 2, %s14
      // Predicated region
      $region69: #{tpu_custom_call.1} parent=5 // pred_check
        %p823 = pneg %p822
      $region70: #{tpu_custom_call.1} parent=5 // pred_check_branch
        %825 = sbr.rel (%p823) target = $region72
      $region71: #{tpu_custom_call.1} parent=5 // pred_region
        %s826 = ssub.s32 %s14, 2
        // Predicated region
        $region73: #{tpu_custom_call.1} parent=71 // pred_check
          %p827 = pneg %p169
        $region74: #{tpu_custom_call.1} parent=71 // pred_check_branch
          %829 = sbr.rel (%p827) target = $region76
        $region75: #{tpu_custom_call.1} parent=71 // pred_region
          %s830 = sand.u32 %s154, 1
          %s831 = scalar_lea.sflag [#allocation11], %s830
          %s832 = sand.u32 %s154, 1
          %s833 = smul.addr %s832, 8
          %s834 = scalar_lea.vmem [#allocation10], %s833
          %835 = dma.done %s831, 128
        $region76: #{tpu_custom_call.1} parent=71 // pred_fallthru
          _
      $region72: #{tpu_custom_call.1} parent=5 // pred_fallthru
        _
    $region6: #{tpu_custom_call.1} parent=1 // loop_footer
      %s18 = sadd.s32 1, %s14
    $region7: #{tpu_custom_call.1} parent=1 // loop_footer_branch
      %13 = sbr.rel target = $region3
    $region8: #{tpu_custom_call.1} parent=1 // loop_exit
      _
    %836 = vsyncpa [#allocation11], 1
    %s837 = scalar_lea.sflag [#allocation11], 1
    %838 = vsyncpa %s837, 1

</llo_original>
